<compile_context>
chip_gen: v7x
topology: tpu7x:2x2x1
jax: 0.10.0
libtpu: 0.0.40
codegen_flags: <defaults>
</compile_context>

<pallas_src>
import functools

import jax
import jax.numpy as jnp
from jax import lax
from jax.experimental import pallas as pl
from jax.experimental.pallas import tpu as pltpu

NUM_CLASSES = 3
# Lanes per batch tile. x-block is D*TILE_B*4 bytes (x2 pipeline buffers) -->
# comfortably inside v7x's 64 MiB VMEM (half of v5e/v6e) for any reasonable D.
_MAX_TILE_B = 512


def _class_prob_rows(xT_ref, wT_ref, b_ref):
    """softmax(x W^T + b) computed in transposed (batch-on-lanes) space.

    xT_ref: (D, TILE_B) VMEM   wT_ref: (D, NUM_CLASSES) VMEM   b_ref: (3,) SMEM
    Returns NUM_CLASSES rows, each (1, TILE_B) f32.
    """
    xT = xT_ref[...]                                        # (D, TILE_B)
    logits = []
    for c in range(NUM_CLASSES):                            # class axis unrolled
        wc = wT_ref[:, c:c + 1]                             # (D, 1), lane-broadcast
        lc = jnp.sum(xT * wc, axis=0, keepdims=True)        # (1, TILE_B)
        logits.append(lc + b_ref[c])                        # SMEM scalar bias add
    m = logits[0]
    for l in logits[1:]:
        m = jnp.maximum(m, l)
    es = [jnp.exp(l - m) for l in logits]                   # EUP
    denom = es[0]
    for e in es[1:]:
        denom = denom + e
    # Exact reciprocal keeps the 1e-5 output check; approx=True is the free
    # EUP-slot option if ~1e-3 relative error in the probabilities is OK.
    inv = pl.reciprocal(denom, approx=False)
    return [e * inv for e in es]


def predict_kernel(xT_ref, wT_ref, b_ref, probsT_ref):
    probs = _class_prob_rows(xT_ref, wT_ref, b_ref)
    for c in range(NUM_CLASSES):
        probsT_ref[c:c + 1, :] = probs[c]                   # lane-dense stores


def fused_kernel(xT_ref, wT_ref, b_ref, y_ref, probsT_ref, loss_ref, *,
                 batch_total, tile_b):
    probs = _class_prob_rows(xT_ref, wT_ref, b_ref)
    for c in range(NUM_CLASSES):
        probsT_ref[c:c + 1, :] = probs[c]

    # Torch quirk reproduced: cross_entropy applied to the already-softmaxed
    # probabilities => nll = logsumexp(probs) - probs[label].  probs lie in
    # (0, 1], so the usual max-subtraction pass is unnecessary (perf feedback).
    exps = [jnp.exp(p) for p in probs]
    se = exps[0]
    for e in exps[1:]:
        se = se + e
    lse = jnp.log(se)                                       # (1, TILE_B)

    labels = y_ref[...]                                     # (1, TILE_B) int32 on lanes
    sel = jnp.zeros_like(lse)
    for c in range(NUM_CLASSES):                            # lane-dense one-hot select
        sel = sel + jnp.where(labels == c, probs[c], 0.0)
    nll = lse - sel                                         # (1, TILE_B)

    # Mask any batch-padding columns of the last tile, then emit the per-tile
    # partial sum as a single SMEM scalar (the mean is finished in the wrapper,
    # keeping the grid axis safe to mark "parallel").
    col = pl.program_id(0) * tile_b + lax.broadcasted_iota(jnp.int32, nll.shape, 1)
    nll = jnp.where(col < batch_total, nll, 0.0)
    loss_ref[0, 0] = jnp.sum(nll)


def _prepare(x, weight, bias):
    B, D = x.shape
    if B <= _MAX_TILE_B:
        tb, bp = B, B                    # single tile; block == full array (legal)
    else:
        tb = _MAX_TILE_B
        bp = ((B + tb - 1) // tb) * tb   # pad batch to a lane-tile multiple
    xT = x.astype(jnp.float32).T         # (D, B): batch on lanes (lane-dense)
    if bp != B:
        xT = jnp.pad(xT, ((0, 0), (0, bp - B)))
    # One tiny (3,D)->(D,3) transpose lets the kernel contract D on sublanes
    # with batch on lanes; done once per call, negligible vs the lane-dense win.
    wT = weight.astype(jnp.float32).T                         # (D, 3)
    b = bias.astype(jnp.float32).reshape(NUM_CLASSES)         # (3,) -> SMEM scalars
    return xT, wT, b, B, D, tb, bp


def torch_model_forward(x, weight, bias, y=None, *, return_probs=False):
    """x: (B, D) f32; weight: (3, D) torch Linear layout; bias: (3,);
    y: optional (B,) int class indices.  y is None -> probs (B, 3);
    else -> scalar mean loss (and the probs too if return_probs=True,
    from the SAME fused pallas_call)."""
    xT, wT, b, B, D, tb, bp = _prepare(x, weight, bias)
    num_tiles = bp // tb
    grid = (num_tiles,)

    x_spec = pl.BlockSpec((D, tb), lambda i: (0, i))
    w_spec = pl.BlockSpec((D, NUM_CLASSES), lambda i: (0, 0))           # resident
    b_spec = pl.BlockSpec(memory_space=pltpu.MemorySpace.SMEM)          # 3 scalars
    probs_spec = pl.BlockSpec((NUM_CLASSES, tb), lambda i: (0, i))      # lane-dense
    cparams = pltpu.CompilerParams(dimension_semantics=("parallel",))

    if y is None:
        probsT = pl.pallas_call(
            predict_kernel,
            out_shape=jax.ShapeDtypeStruct((NUM_CLASSES, bp), jnp.float32),
            grid=grid,
            in_specs=[x_spec, w_spec, b_spec],
            out_specs=probs_spec,
            compiler_params=cparams,
        )(xT, wT, b)
        return probsT[:, :B].T                               # (B, 3)

    y_row = y.astype(jnp.int32).reshape(1, B)                # labels on lanes
    if bp != B:
        y_row = jnp.pad(y_row, ((0, 0), (0, bp - B)))
    y_spec = pl.BlockSpec((1, tb), lambda i: (0, i))
    loss_spec = pl.BlockSpec((1, 1), lambda i: (i, 0),
                             memory_space=pltpu.MemorySpace.SMEM)

    kernel = functools.partial(fused_kernel, batch_total=B, tile_b=tb)
    probsT, loss_parts = pl.pallas_call(
        kernel,
        out_shape=(jax.ShapeDtypeStruct((NUM_CLASSES, bp), jnp.float32),
                   jax.ShapeDtypeStruct((num_tiles, 1), jnp.float32)),
        grid=grid,
        in_specs=[x_spec, w_spec, b_spec, y_spec],
        out_specs=(probs_spec, loss_spec),
        compiler_params=cparams,
    )(xT, wT, b, y_row)

    loss = jnp.sum(loss_parts) / jnp.float32(B)              # reduction='mean'
    if return_probs:
        return probsT[:, :B].T, loss
    return loss


if __name__ == "__main__":
    key = jax.random.PRNGKey(0)
    k_x, k_w, k_b, k_y = jax.random.split(key, 4)

    batch, input_size = 16, 8
    x = jax.random.normal(k_x, (batch, input_size), dtype=jnp.float32)
    bound = 1.0 / (input_size ** 0.5)
    weight = jax.random.uniform(k_w, (NUM_CLASSES, input_size),
                                minval=-bound, maxval=bound, dtype=jnp.float32)
    bias = jax.random.uniform(k_b, (NUM_CLASSES,),
                              minval=-bound, maxval=bound, dtype=jnp.float32)
    y = jax.random.randint(k_y, (batch,), 0, NUM_CLASSES, dtype=jnp.int32)

    # Inference branch: y_pred = softmax(x @ W^T + b, dim=1)
    y_pred = jax.block_until_ready(torch_model_forward(x, weight, bias))

    # Training branch: ONE fused kernel launch yields both probs and loss.
    probs_fused, loss = jax.block_until_ready(
        torch_model_forward(x, weight, bias, y, return_probs=True))

    # Plain-JAX reference.
    logits_ref = x @ weight.T + bias
    probs_ref = jax.nn.softmax(logits_ref, axis=1)
    loss_ref = jnp.mean(
        -jnp.take_along_axis(jax.nn.log_softmax(probs_ref, axis=1),
                             y[:, None], axis=1))

    assert jnp.allclose(y_pred, probs_ref, atol=1e-5)
    assert jnp.allclose(probs_fused, probs_ref, atol=1e-5)
    assert jnp.allclose(loss, loss_ref, atol=1e-5)
    assert jnp.allclose(jnp.sum(y_pred, axis=1), 1.0, atol=1e-5)

    print("KERNEL_OK")
</pallas_src>

<mosaic_0001>
module attributes {stable_mosaic.version = 11 : i64} {
  func.func @predict_kernel(%arg0: i32, %arg1: memref<8x16xf32, #tpu.memory_space<vmem>>, %arg2: memref<8x3xf32, #tpu.memory_space<vmem>>, %arg3: memref<3xf32, #tpu.memory_space<smem>>, %arg4: memref<3x16xf32, #tpu.memory_space<vmem>>) attributes {dimension_semantics = [#tpu.dimension_semantics<parallel>], iteration_bounds = array<i64: 1>, scalar_prefetch = 0 : i64, scratch_operands = 0 : i64, tpu.core_type = #tpu.core_type<tc>, window_params = [{transform_indices = @transform_0, window_bounds = array<i64: 8, 16>}, {pipeline_mode = #tpu.pipeline_mode<synchronous>, transform_indices = @transform_1, window_bounds = array<i64: 8, 3>}, {transform_indices = @transform_2, window_bounds = array<i64: 3>}, {transform_indices = @transform_3, window_bounds = array<i64: 3, 16>}]} {
    %c0 = arith.constant 0 : index
    %c0_0 = arith.constant 0 : index
    %0 = vector.load %arg1[%c0, %c0_0] : memref<8x16xf32, #tpu.memory_space<vmem>>, vector<8x16xf32>
    %c0_1 = arith.constant 0 : index
    %c0_2 = arith.constant 0 : index
    %1 = vector.load %arg2[%c0_1, %c0_2] : memref<8x3xf32, #tpu.memory_space<vmem>>, vector<8x1xf32>
    %2 = vector.broadcast %1 : vector<8x1xf32> to vector<8x16xf32>
    %3 = arith.mulf %0, %2 : vector<8x16xf32>
    %cst = arith.constant dense<0.000000e+00> : vector<16xf32>
    %4 = vector.multi_reduction <add>, %3, %cst [0] : vector<8x16xf32> to vector<16xf32>
    %5 = vector.shape_cast %4 : vector<16xf32> to vector<1x16xf32>
    %c0_3 = arith.constant 0 : index
    %6 = memref.load %arg3[%c0_3] : memref<3xf32, #tpu.memory_space<smem>>
    %7 = vector.broadcast %6 : f32 to vector<1x16xf32>
    %8 = arith.addf %5, %7 : vector<1x16xf32>
    %c0_4 = arith.constant 0 : index
    %c1 = arith.constant 1 : index
    %9 = vector.load %arg2[%c0_4, %c1] : memref<8x3xf32, #tpu.memory_space<vmem>>, vector<8x1xf32>
    %10 = vector.broadcast %9 : vector<8x1xf32> to vector<8x16xf32>
    %11 = arith.mulf %0, %10 : vector<8x16xf32>
    %cst_5 = arith.constant dense<0.000000e+00> : vector<16xf32>
    %12 = vector.multi_reduction <add>, %11, %cst_5 [0] : vector<8x16xf32> to vector<16xf32>
    %13 = vector.shape_cast %12 : vector<16xf32> to vector<1x16xf32>
    %c1_6 = arith.constant 1 : index
    %14 = memref.load %arg3[%c1_6] : memref<3xf32, #tpu.memory_space<smem>>
    %15 = vector.broadcast %14 : f32 to vector<1x16xf32>
    %16 = arith.addf %13, %15 : vector<1x16xf32>
    %c0_7 = arith.constant 0 : index
    %c2 = arith.constant 2 : index
    %17 = vector.load %arg2[%c0_7, %c2] : memref<8x3xf32, #tpu.memory_space<vmem>>, vector<8x1xf32>
    %18 = vector.broadcast %17 : vector<8x1xf32> to vector<8x16xf32>
    %19 = arith.mulf %0, %18 : vector<8x16xf32>
    %cst_8 = arith.constant dense<0.000000e+00> : vector<16xf32>
    %20 = vector.multi_reduction <add>, %19, %cst_8 [0] : vector<8x16xf32> to vector<16xf32>
    %21 = vector.shape_cast %20 : vector<16xf32> to vector<1x16xf32>
    %c2_9 = arith.constant 2 : index
    %22 = memref.load %arg3[%c2_9] : memref<3xf32, #tpu.memory_space<smem>>
    %23 = vector.broadcast %22 : f32 to vector<1x16xf32>
    %24 = arith.addf %21, %23 : vector<1x16xf32>
    %25 = arith.maximumf %8, %16 : vector<1x16xf32>
    %26 = arith.maximumf %25, %24 : vector<1x16xf32>
    %27 = arith.subf %8, %26 : vector<1x16xf32>
    %28 = math.exp %27 : vector<1x16xf32>
    %29 = arith.subf %16, %26 : vector<1x16xf32>
    %30 = math.exp %29 : vector<1x16xf32>
    %31 = arith.subf %24, %26 : vector<1x16xf32>
    %32 = math.exp %31 : vector<1x16xf32>
    %33 = arith.addf %28, %30 : vector<1x16xf32>
    %34 = arith.addf %33, %32 : vector<1x16xf32>
    %35 = tpu.reciprocal %34 : vector<1x16xf32> -> vector<1x16xf32>
    %36 = arith.mulf %28, %35 : vector<1x16xf32>
    %37 = arith.mulf %30, %35 : vector<1x16xf32>
    %38 = arith.mulf %32, %35 : vector<1x16xf32>
    %c0_10 = arith.constant 0 : index
    %c0_11 = arith.constant 0 : index
    %39 = vector.load %arg4[%c0_10, %c0_11] : memref<3x16xf32, #tpu.memory_space<vmem>>, vector<1x16xf32>
    tpu.vector_store %arg4[%c0_10, %c0_11], %36 {strides = array<i32>} : memref<3x16xf32, #tpu.memory_space<vmem>>, vector<1x16xf32>,
    %c1_12 = arith.constant 1 : index
    %c0_13 = arith.constant 0 : index
    %40 = vector.load %arg4[%c1_12, %c0_13] : memref<3x16xf32, #tpu.memory_space<vmem>>, vector<1x16xf32>
    tpu.vector_store %arg4[%c1_12, %c0_13], %37 {strides = array<i32>} : memref<3x16xf32, #tpu.memory_space<vmem>>, vector<1x16xf32>,
    %c2_14 = arith.constant 2 : index
    %c0_15 = arith.constant 0 : index
    %41 = vector.load %arg4[%c2_14, %c0_15] : memref<3x16xf32, #tpu.memory_space<vmem>>, vector<1x16xf32>
    tpu.vector_store %arg4[%c2_14, %c0_15], %38 {strides = array<i32>} : memref<3x16xf32, #tpu.memory_space<vmem>>, vector<1x16xf32>,
    return
  }
  func.func @transform_0(%arg0: i32) -> (i32, i32) {
    %c0_i32 = arith.constant 0 : i32
    %c0_i32_0 = arith.constant 0 : i32
    return %c0_i32, %arg0 : i32, i32
  }
  func.func @transform_1(%arg0: i32) -> (i32, i32) {
    %c0_i32 = arith.constant 0 : i32
    %c0_i32_0 = arith.constant 0 : i32
    %c0_i32_1 = arith.constant 0 : i32
    return %c0_i32, %c0_i32_0 : i32, i32
  }
  func.func @transform_2(%arg0: i32) -> i32 {
    %c0_i32 = arith.constant 0 : i32
    %c0_i32_0 = arith.constant 0 : i32
    return %c0_i32 : i32
  }
  func.func @transform_3(%arg0: i32) -> (i32, i32) {
    %c0_i32 = arith.constant 0 : i32
    %c0_i32_0 = arith.constant 0 : i32
    return %c0_i32, %arg0 : i32, i32
  }
}

</mosaic_0001>

<llo_original>
// kernel: tpu_custom_call.1
$region0: #{tpu_custom_call.1}
  #allocation0 [shape = 'u32[]', space=smem, size = 0x4, offset = 0x4, fixed_abs, tag = 'smem constant byte address 0x4 - core index']
  #allocation1 [shape = 'u32[144,128]{1,0:T(1,128)}', space=vmem, size = 0x12000, scoped, tag = 'internal scratch']
  %s0 = inlined_call_operand.vmem [shape: f32[8,16], index: 0, kind: input, shape index: {}]
  %s1 = inlined_call_operand.vmem [shape: f32[8,3], index: 1, kind: input, shape index: {}]
  %s2 = inlined_call_operand.vmem [shape: f32[3], index: 2, kind: input, shape index: {}]
  %s3 = inlined_call_operand.hbm [shape: f32[3,16], index: 3, kind: output, shape index: {}]
  %s4 = sld [smem:[#allocation0]]
  $region26: #{tpu_custom_call.1} parent=0
    _
  %s6 = ssub.s32 1, %s4
  %s7 = scalar_select 0, %s6, %s4
  $region1: #{tpu_custom_call.1} parent=0
    #allocation2 [shape = 'u8[512]{0}', space=smem, size = 0x200, scoped, tag = 'input window, operand 2, single buffered']
    #allocation3 [shape = 's32[1]{0}', space=sflag, size = 0x4, scoped, tag = 'scoped memory for tpu_custom_call.1']
    #allocation4 [shape = 's32[1]{0}', space=sflag, size = 0x4, scoped, tag = 'scoped memory for tpu_custom_call.1']
    #allocation5 [shape = 'u8[2048]{0}', space=vmem, size = 0x800, scoped, tag = 'output window, operand 0, single buffered']
    %8 = vsyncpa [#allocation4], 0
    %9 = vsyncpa [#allocation3], 0
    // Predicated region
    $region2: #{tpu_custom_call.1} parent=1 // pred_check
      _
    $region3: #{tpu_custom_call.1} parent=1 // pred_check_branch
      %11 = sbr.rel (0) target = $region5
    $region4: #{tpu_custom_call.1} parent=1 // pred_region
      _
    $region5: #{tpu_custom_call.1} parent=1 // pred_fallthru
      _
    // Predicated region
    $region6: #{tpu_custom_call.1} parent=1 // pred_check
      _
    $region7: #{tpu_custom_call.1} parent=1 // pred_check_branch
      %13 = sbr.rel (0) target = $region9
    $region8: #{tpu_custom_call.1} parent=1 // pred_region
      _
    $region9: #{tpu_custom_call.1} parent=1 // pred_fallthru
      _
    // Predicated region
    $region10: #{tpu_custom_call.1} parent=1 // pred_check
      _
    $region11: #{tpu_custom_call.1} parent=1 // pred_check_branch
      %15 = sbr.rel (0) target = $region13
    $region12: #{tpu_custom_call.1} parent=1 // pred_region
      %s17 = ssub.s32 16, 16
      %18 = vsyncadd [#allocation4], %s17
      %s20 = sshll.u32 %s2, 4
      %s21 = int_to_ptr.vmem [resolvable:$true] %s20
      %23 = dma.vmem_to_smem %s21, 16, [#allocation2], [#allocation4]
    $region13: #{tpu_custom_call.1} parent=1 // pred_fallthru
      _
    // Predicated region
    $region14: #{tpu_custom_call.1} parent=1 // pred_check
      _
    $region15: #{tpu_custom_call.1} parent=1 // pred_check_branch
      %25 = sbr.rel (0) target = $region17
    $region16: #{tpu_custom_call.1} parent=1 // pred_region
      %26 = dma.done [#allocation4], 16
    $region17: #{tpu_custom_call.1} parent=1 // pred_fallthru
      _
    %27 = sfence
    %v28 = vld [vmem:[%s0] sm:$0xff]
    %v29 = vld [vmem:[%s1] sm:$0xff]
    %31 = vset.pattern.permute.xlu0 0
    %32 = vperm.xlu0 %31, %v29
    %v33 = vpop.permute.xlu0 %32
    %v35 = vmul.f32 %v28, %v33
    %vm36 = vcmask 130048
    %v37 = vsel %vm36, %v35, 0.0
    %v38 = vrot.slane %v37, 4
    %v39 = vadd.f32 %v37, %v38
    %v40 = vrot.slane %v39, 2
    %v41 = vadd.f32 %v39, %v40
    %v42 = vrot.slane %v41, 1
    %v43 = vadd.f32 %v41, %v42
    %s44 = sld [smem:[#allocation2]]
    %v45 = vstv %s44
    %v46 = vadd.f32 %v43, %v45
    %47 = vset.pattern.permute.xlu0 1
    %48 = vperm.xlu0 %47, %v29
    %v49 = vpop.permute.xlu0 %48
    %v51 = vmul.f32 %v28, %v49
    %v52 = vsel %vm36, %v51, 0.0
    %v53 = vrot.slane %v52, 4
    %v54 = vadd.f32 %v52, %v53
    %v55 = vrot.slane %v54, 2
    %v56 = vadd.f32 %v54, %v55
    %v57 = vrot.slane %v56, 1
    %v58 = vadd.f32 %v56, %v57
    %s59 = sld [smem:[#allocation2 + $0x1]]
    %v60 = vstv %s59
    %v61 = vadd.f32 %v58, %v60
    %62 = vset.pattern.permute.xlu0 2
    %63 = vperm.xlu0 %62, %v29
    %v64 = vpop.permute.xlu0 %63
    %v66 = vmul.f32 %v28, %v64
    %v67 = vsel %vm36, %v66, 0.0
    %v68 = vrot.slane %v67, 4
    %v69 = vadd.f32 %v67, %v68
    %v70 = vrot.slane %v69, 2
    %v71 = vadd.f32 %v69, %v70
    %v72 = vrot.slane %v71, 1
    %v73 = vadd.f32 %v71, %v72
    %s74 = sld [smem:[#allocation2 + $0x2]]
    %v75 = vstv %s74
    %v76 = vadd.f32 %v73, %v75
    %v77 = vmax.f32 %v46, %v61
    %v78 = vmax.f32 %v77, %v76
    %v79 = vsub.f32 %v46, %v78
    %v80 = vmul.f32 %v79, 1.442695
    %v81 = vpow.pop %v80
    %v82 = vsub.f32 %v61, %v78
    %v83 = vmul.f32 %v82, 1.442695
    %v84 = vpow.pop %v83
    %v85 = vsub.f32 %v76, %v78
    %v86 = vmul.f32 %v85, 1.442695
    %v87 = vpow.pop %v86
    %v88 = vadd.f32 %v81, %v84
    %v89 = vadd.f32 %v88, %v87
    %v90 = vrcp.pop %v89
    %v91 = vmul.f32 %v81, %v90
    %v92 = vmul.f32 %v84, %v90
    %v93 = vmul.f32 %v87, %v90
    %vm94 = vcmask 122880
    %95 = vst.msk [vmem:[#allocation5] sm:$0x1] %vm94, %v91
    %96 = vst.msk [vmem:[#allocation5 + $0x1] sm:$0x1] %vm94, %v92
    %97 = vst.msk [vmem:[#allocation5 + $0x2] sm:$0x1] %vm94, %v93
    // Predicated region
    $region18: #{tpu_custom_call.1} parent=1 // pred_check
      _
    $region19: #{tpu_custom_call.1} parent=1 // pred_check_branch
      %99 = sbr.rel (0) target = $region21
    $region20: #{tpu_custom_call.1} parent=1 // pred_region
      %s101 = ssub.s32 64, 64
      %102 = vsyncadd [#allocation3], %s101
      %s104 = sshll.u32 [#allocation5], 4
      %s105 = int_to_ptr.vmem [resolvable:$true] %s104
      %107 = dma.vmem_to_hbm [thread:$0]  %s105, 64, %s3, [#allocation3]
    $region21: #{tpu_custom_call.1} parent=1 // pred_fallthru
      _
    // Predicated region
    $region22: #{tpu_custom_call.1} parent=1 // pred_check
      _
    $region23: #{tpu_custom_call.1} parent=1 // pred_check_branch
      %109 = sbr.rel (0) target = $region25
    $region24: #{tpu_custom_call.1} parent=1 // pred_region
      %110 = dma.done [#allocation3], 64
    $region25: #{tpu_custom_call.1} parent=1 // pred_fallthru
      _
    %111 = vsyncpa [#allocation3], 1
    %112 = vsyncpa [#allocation4], 1

</llo_original>
